<compile_context>
chip_gen: v5e
topology: v5e:2x2
jax: 0.10.0
libtpu: 0.0.40
codegen_flags: <defaults>
</compile_context>

<pallas_src>
import functools
import math

import jax
import jax.numpy as jnp
from jax.experimental import pallas as pl
from jax.experimental.pallas import tpu as pltpu


def _attn_block_kernel(x_ref, wq_ref, wk_ref, wv_ref, wo_ref, bo_ref,
                       g_ref, beta_ref, o_ref, *, heads, scale, eps):
    """Fused QKV -> per-position head-mix attention -> fc_out -> +x -> LN."""
    x = x_ref[...]                                         # (tm, E) f32
    e = x.shape[-1]
    d = e // heads

    q = jnp.dot(x, wq_ref[...], preferred_element_type=jnp.float32)
    k = jnp.dot(x, wk_ref[...], preferred_element_type=jnp.float32)
    v = jnp.dot(x, wv_ref[...], preferred_element_type=jnp.float32)

    # Static lane-slices into heads (kept in VMEM / vregs, no HBM traffic).
    q_h = [q[:, h * d:(h + 1) * d] for h in range(heads)]
    k_h = [k[:, h * d:(h + 1) * d] for h in range(heads)]
    v_h = [v[:, h * d:(h + 1) * d] for h in range(heads)]

    out_heads = []
    for h in range(heads):
        # energy[b, h, g] = <q_h[b, :], k_g[b, :]> / sqrt(embed_size)
        en = [jnp.sum(q_h[h] * k_h[g], axis=-1, keepdims=True) * scale
              for g in range(heads)]                       # each (tm, 1)
        m = en[0]
        for g in range(1, heads):
            m = jnp.maximum(m, en[g])
        ex = [jnp.exp(en[g] - m) for g in range(heads)]
        den = ex[0]
        for g in range(1, heads):
            den = den + ex[g]
        inv = 1.0 / den
        acc = (ex[0] * inv) * v_h[0]
        for g in range(1, heads):
            acc = acc + (ex[g] * inv) * v_h[g]
        out_heads.append(acc)                              # (tm, d)
    attn = jnp.concatenate(out_heads, axis=-1)             # (tm, E)

    # fc_out + bias + residual + LayerNorm (eps matches torch default 1e-5).
    y = jnp.dot(attn, wo_ref[...], preferred_element_type=jnp.float32)
    y = y + bo_ref[...] + x
    mean = jnp.mean(y, axis=-1, keepdims=True)
    var = jnp.mean((y - mean) * (y - mean), axis=-1, keepdims=True)
    yn = (y - mean) * jax.lax.rsqrt(var + eps)
    o_ref[...] = (yn * g_ref[...] + beta_ref[...]).astype(o_ref.dtype)


def _pick_row_tile(nrows):
    # Largest tile <= 256 that divides the row count and still leaves >= 2
    # grid steps (so dimension_semantics=("parallel",) can use both v7x TCs).
    for tm in (256, 128, 64, 32, 16, 8):
        if nrows % tm == 0 and nrows // tm >= 2:
            return tm
    return nrows


def attention_block(x, wq, wk, wv, wo, bo, gamma, beta, *, heads):
    n, l, e = x.shape
    rows = n * l
    x2 = x.reshape(rows, e)
    tm = _pick_row_tile(rows)
    kern = functools.partial(_attn_block_kernel, heads=heads,
                             scale=1.0 / math.sqrt(e), eps=1e-5)
    out = pl.pallas_call(
        kern,
        out_shape=jax.ShapeDtypeStruct((rows, e), x.dtype),
        grid_spec=pltpu.PrefetchScalarGridSpec(
            num_scalar_prefetch=0,
            grid=(rows // tm,),
            in_specs=[
                pl.BlockSpec((tm, e), lambda i: (i, 0)),
                pl.BlockSpec((e, e), lambda i: (0, 0)),
                pl.BlockSpec((e, e), lambda i: (0, 0)),
                pl.BlockSpec((e, e), lambda i: (0, 0)),
                pl.BlockSpec((e, e), lambda i: (0, 0)),
                pl.BlockSpec((1, e), lambda i: (0, 0)),
                pl.BlockSpec((1, e), lambda i: (0, 0)),
                pl.BlockSpec((1, e), lambda i: (0, 0)),
            ],
            out_specs=pl.BlockSpec((tm, e), lambda i: (i, 0)),
        ),
        compiler_params=pltpu.CompilerParams(
            dimension_semantics=("parallel",)),
    )(x2, wq, wk, wv, wo, bo.reshape(1, e), gamma.reshape(1, e),
      beta.reshape(1, e))
    return out.reshape(n, l, e)


def _pooled_cross_attn_kernel(out_ref, att_ref, w_ref, *, n_batch, scale):
    # query  = mean over the sequence of `out`        -> (n_batch, E)
    # keys/values for batch item i = out[i, 2:, :]    -> (L-2, E)
    o_rows = [out_ref[i] for i in range(n_batch)]          # each (L, E)
    state = jnp.concatenate(
        [jnp.mean(o_i, axis=0, keepdims=True) for o_i in o_rows],
        axis=0)                                            # (n_batch, E)
    for i in range(n_batch):
        e_act = o_rows[i][2:, :]                           # (L-2, E)
        scores = jax.lax.dot_general(
            state, e_act, (((1,), (1,)), ((), ())),
            preferred_element_type=jnp.float32) * scale    # (n_batch, L-2)
        m = jnp.max(scores, axis=-1, keepdims=True)
        p = jnp.exp(scores - m)
        w = p / jnp.sum(p, axis=-1, keepdims=True)
        att_ref[i] = jnp.dot(
            w, e_act, preferred_element_type=jnp.float32).astype(att_ref.dtype)
        w_ref[i] = w.astype(w_ref.dtype)


def pooled_cross_attention(out):
    n, l, e = out.shape
    lk = l - 2
    kern = functools.partial(_pooled_cross_attn_kernel, n_batch=n,
                             scale=1.0 / math.sqrt(e))
    att, w = pl.pallas_call(
        kern,
        out_shape=(jax.ShapeDtypeStruct((n, n, e), out.dtype),
                   jax.ShapeDtypeStruct((n, n, lk), jnp.float32)),
        grid_spec=pltpu.PrefetchScalarGridSpec(
            num_scalar_prefetch=0,
            grid=(1,),
            in_specs=[pl.BlockSpec((n, l, e), lambda i: (0, 0, 0))],
            out_specs=(pl.BlockSpec((n, n, e), lambda i: (0, 0, 0)),
                       pl.BlockSpec((n, n, lk), lambda i: (0, 0, 0))),
        ),
        compiler_params=pltpu.CompilerParams(
            dimension_semantics=("arbitrary",)),
    )(out)
    # torch: .unsqueeze(0) on both returned tensors
    return att[None], w[None]


def init_actor_params(key, embed_size):
    """Weights stored as [in, out] (transposed vs torch's [out, in]) so the
    kernel computes x @ W directly."""
    ks = jax.random.split(key, 5)
    s = 1.0 / math.sqrt(embed_size)
    wq = jax.random.normal(ks[0], (embed_size, embed_size), jnp.float32) * s
    wk = jax.random.normal(ks[1], (embed_size, embed_size), jnp.float32) * s
    wv = jax.random.normal(ks[2], (embed_size, embed_size), jnp.float32) * s
    wo = jax.random.normal(ks[3], (embed_size, embed_size), jnp.float32) * s
    bo = jax.random.normal(ks[4], (embed_size,), jnp.float32) * s
    gamma = jnp.ones((embed_size,), jnp.float32)   # LayerNorm weight
    beta = jnp.zeros((embed_size,), jnp.float32)   # LayerNorm bias
    return (wq, wk, wv, wo, bo, gamma, beta)


def actor_network_forward(x, params, *, heads):
    """Mirrors ActorNetwork.forward(combined_embeddings, mask=None)."""
    out = attention_block(x, *params, heads=heads)          # (N, L, E)
    # torch stores self.e_state = mean of out[0,0] and out[0,1] (and prints);
    # we compute it (no prints) and return it as an auxiliary value.
    e_state_flat = jnp.mean(out[0, 0:2, :], axis=0, keepdims=True)  # (1, E)
    attended_output, attention_weights = pooled_cross_attention(out)
    return attended_output, attention_weights, e_state_flat


if __name__ == "__main__":
    # Small shapes consistent with the module: batch N=2, seq_len L=8,
    # embed_size E=128 (lane-dense), heads=4 -> head_dim=32.
    N, L, E, H = 2, 8, 128, 4

    key = jax.random.PRNGKey(0)
    kx, kp = jax.random.split(key)
    x = jax.random.normal(kx, (N, L, E), jnp.float32)
    params = init_actor_params(kp, E)

    attended, weights, e_state = actor_network_forward(x, params, heads=H)
    attended = jax.block_until_ready(attended)
    weights = jax.block_until_ready(weights)
    e_state = jax.block_until_ready(e_state)

    assert attended.shape == (1, N, N, E)
    assert weights.shape == (1, N, N, L - 2)
    assert e_state.shape == (1, E)
    print("KERNEL_OK")
</pallas_src>

<mosaic_0001>
module attributes {stable_mosaic.version = 11 : i64} {
  func.func @_attn_block_kernel(%arg0: i32, %arg1: memref<8x128xf32, #tpu.memory_space<vmem>>, %arg2: memref<128x128xf32, #tpu.memory_space<vmem>>, %arg3: memref<128x128xf32, #tpu.memory_space<vmem>>, %arg4: memref<128x128xf32, #tpu.memory_space<vmem>>, %arg5: memref<128x128xf32, #tpu.memory_space<vmem>>, %arg6: memref<1x128xf32, #tpu.memory_space<vmem>>, %arg7: memref<1x128xf32, #tpu.memory_space<vmem>>, %arg8: memref<1x128xf32, #tpu.memory_space<vmem>>, %arg9: memref<8x128xf32, #tpu.memory_space<vmem>>) attributes {dimension_semantics = [#tpu.dimension_semantics<parallel>], iteration_bounds = array<i64: 2>, scalar_prefetch = 0 : i64, scratch_operands = 0 : i64, tpu.core_type = #tpu.core_type<tc>, window_params = [{transform_indices = @transform_0, window_bounds = array<i64: 8, 128>}, {pipeline_mode = #tpu.pipeline_mode<synchronous>, transform_indices = @transform_1, window_bounds = array<i64: 128, 128>}, {pipeline_mode = #tpu.pipeline_mode<synchronous>, transform_indices = @transform_2, window_bounds = array<i64: 128, 128>}, {pipeline_mode = #tpu.pipeline_mode<synchronous>, transform_indices = @transform_3, window_bounds = array<i64: 128, 128>}, {pipeline_mode = #tpu.pipeline_mode<synchronous>, transform_indices = @transform_4, window_bounds = array<i64: 128, 128>}, {pipeline_mode = #tpu.pipeline_mode<synchronous>, transform_indices = @transform_5, window_bounds = array<i64: 1, 128>}, {pipeline_mode = #tpu.pipeline_mode<synchronous>, transform_indices = @transform_6, window_bounds = array<i64: 1, 128>}, {pipeline_mode = #tpu.pipeline_mode<synchronous>, transform_indices = @transform_7, window_bounds = array<i64: 1, 128>}, {transform_indices = @transform_8, window_bounds = array<i64: 8, 128>}]} {
    %c0 = arith.constant 0 : index
    %c0_0 = arith.constant 0 : index
    %0 = vector.load %arg1[%c0, %c0_0] : memref<8x128xf32, #tpu.memory_space<vmem>>, vector<8x128xf32>
    %c0_1 = arith.constant 0 : index
    %c0_2 = arith.constant 0 : index
    %1 = vector.load %arg2[%c0_1, %c0_2] : memref<128x128xf32, #tpu.memory_space<vmem>>, vector<128x128xf32>
    %cst = arith.constant dense<0.000000e+00> : vector<8x128xf32>
    %2 = tpu.matmul %0, %1, %cst {dimension_numbers = #tpu.dot_dimension_numbers<[1], [0], [0], [1], [0, 0, 1, 1], [], []>} : vector<8x128xf32>, vector<128x128xf32>, vector<8x128xf32> -> vector<8x128xf32>
    %c0_3 = arith.constant 0 : index
    %c0_4 = arith.constant 0 : index
    %3 = vector.load %arg3[%c0_3, %c0_4] : memref<128x128xf32, #tpu.memory_space<vmem>>, vector<128x128xf32>
    %cst_5 = arith.constant dense<0.000000e+00> : vector<8x128xf32>
    %4 = tpu.matmul %0, %3, %cst_5 {dimension_numbers = #tpu.dot_dimension_numbers<[1], [0], [0], [1], [0, 0, 1, 1], [], []>} : vector<8x128xf32>, vector<128x128xf32>, vector<8x128xf32> -> vector<8x128xf32>
    %c0_6 = arith.constant 0 : index
    %c0_7 = arith.constant 0 : index
    %5 = vector.load %arg4[%c0_6, %c0_7] : memref<128x128xf32, #tpu.memory_space<vmem>>, vector<128x128xf32>
    %cst_8 = arith.constant dense<0.000000e+00> : vector<8x128xf32>
    %6 = tpu.matmul %0, %5, %cst_8 {dimension_numbers = #tpu.dot_dimension_numbers<[1], [0], [0], [1], [0, 0, 1, 1], [], []>} : vector<8x128xf32>, vector<128x128xf32>, vector<8x128xf32> -> vector<8x128xf32>
    %7 = vector.extract_strided_slice %2 {offsets = [0, 0], sizes = [8, 32], strides = [1, 1]} : vector<8x128xf32> to vector<8x32xf32>
    %8 = vector.extract_strided_slice %2 {offsets = [0, 32], sizes = [8, 32], strides = [1, 1]} : vector<8x128xf32> to vector<8x32xf32>
    %9 = vector.extract_strided_slice %2 {offsets = [0, 64], sizes = [8, 32], strides = [1, 1]} : vector<8x128xf32> to vector<8x32xf32>
    %10 = vector.extract_strided_slice %2 {offsets = [0, 96], sizes = [8, 32], strides = [1, 1]} : vector<8x128xf32> to vector<8x32xf32>
    %11 = vector.extract_strided_slice %4 {offsets = [0, 0], sizes = [8, 32], strides = [1, 1]} : vector<8x128xf32> to vector<8x32xf32>
    %12 = vector.extract_strided_slice %4 {offsets = [0, 32], sizes = [8, 32], strides = [1, 1]} : vector<8x128xf32> to vector<8x32xf32>
    %13 = vector.extract_strided_slice %4 {offsets = [0, 64], sizes = [8, 32], strides = [1, 1]} : vector<8x128xf32> to vector<8x32xf32>
    %14 = vector.extract_strided_slice %4 {offsets = [0, 96], sizes = [8, 32], strides = [1, 1]} : vector<8x128xf32> to vector<8x32xf32>
    %15 = vector.extract_strided_slice %6 {offsets = [0, 0], sizes = [8, 32], strides = [1, 1]} : vector<8x128xf32> to vector<8x32xf32>
    %16 = vector.extract_strided_slice %6 {offsets = [0, 32], sizes = [8, 32], strides = [1, 1]} : vector<8x128xf32> to vector<8x32xf32>
    %17 = vector.extract_strided_slice %6 {offsets = [0, 64], sizes = [8, 32], strides = [1, 1]} : vector<8x128xf32> to vector<8x32xf32>
    %18 = vector.extract_strided_slice %6 {offsets = [0, 96], sizes = [8, 32], strides = [1, 1]} : vector<8x128xf32> to vector<8x32xf32>
    %19 = arith.mulf %7, %11 : vector<8x32xf32>
    %cst_9 = arith.constant dense<0.000000e+00> : vector<8xf32>
    %20 = vector.multi_reduction <add>, %19, %cst_9 [1] : vector<8x32xf32> to vector<8xf32>
    %21 = vector.shape_cast %20 : vector<8xf32> to vector<8x1xf32>
    %cst_10 = arith.constant 0.0883883461 : f32
    %22 = vector.broadcast %cst_10 : f32 to vector<8x1xf32>
    %23 = arith.mulf %21, %22 : vector<8x1xf32>
    %24 = arith.mulf %7, %12 : vector<8x32xf32>
    %cst_11 = arith.constant dense<0.000000e+00> : vector<8xf32>
    %25 = vector.multi_reduction <add>, %24, %cst_11 [1] : vector<8x32xf32> to vector<8xf32>
    %26 = vector.shape_cast %25 : vector<8xf32> to vector<8x1xf32>
    %cst_12 = arith.constant 0.0883883461 : f32
    %27 = vector.broadcast %cst_12 : f32 to vector<8x1xf32>
    %28 = arith.mulf %26, %27 : vector<8x1xf32>
    %29 = arith.mulf %7, %13 : vector<8x32xf32>
    %cst_13 = arith.constant dense<0.000000e+00> : vector<8xf32>
    %30 = vector.multi_reduction <add>, %29, %cst_13 [1] : vector<8x32xf32> to vector<8xf32>
    %31 = vector.shape_cast %30 : vector<8xf32> to vector<8x1xf32>
    %cst_14 = arith.constant 0.0883883461 : f32
    %32 = vector.broadcast %cst_14 : f32 to vector<8x1xf32>
    %33 = arith.mulf %31, %32 : vector<8x1xf32>
    %34 = arith.mulf %7, %14 : vector<8x32xf32>
    %cst_15 = arith.constant dense<0.000000e+00> : vector<8xf32>
    %35 = vector.multi_reduction <add>, %34, %cst_15 [1] : vector<8x32xf32> to vector<8xf32>
    %36 = vector.shape_cast %35 : vector<8xf32> to vector<8x1xf32>
    %cst_16 = arith.constant 0.0883883461 : f32
    %37 = vector.broadcast %cst_16 : f32 to vector<8x1xf32>
    %38 = arith.mulf %36, %37 : vector<8x1xf32>
    %39 = arith.maximumf %23, %28 : vector<8x1xf32>
    %40 = arith.maximumf %39, %33 : vector<8x1xf32>
    %41 = arith.maximumf %40, %38 : vector<8x1xf32>
    %42 = arith.subf %23, %41 : vector<8x1xf32>
    %43 = math.exp %42 : vector<8x1xf32>
    %44 = arith.subf %28, %41 : vector<8x1xf32>
    %45 = math.exp %44 : vector<8x1xf32>
    %46 = arith.subf %33, %41 : vector<8x1xf32>
    %47 = math.exp %46 : vector<8x1xf32>
    %48 = arith.subf %38, %41 : vector<8x1xf32>
    %49 = math.exp %48 : vector<8x1xf32>
    %50 = arith.addf %43, %45 : vector<8x1xf32>
    %51 = arith.addf %50, %47 : vector<8x1xf32>
    %52 = arith.addf %51, %49 : vector<8x1xf32>
    %cst_17 = arith.constant 1.000000e+00 : f32
    %53 = vector.broadcast %cst_17 : f32 to vector<8x1xf32>
    %54 = arith.divf %53, %52 : vector<8x1xf32>
    %55 = arith.mulf %43, %54 : vector<8x1xf32>
    %56 = vector.broadcast %55 : vector<8x1xf32> to vector<8x32xf32>
    %57 = arith.mulf %56, %15 : vector<8x32xf32>
    %58 = arith.mulf %45, %54 : vector<8x1xf32>
    %59 = vector.broadcast %58 : vector<8x1xf32> to vector<8x32xf32>
    %60 = arith.mulf %59, %16 : vector<8x32xf32>
    %61 = arith.addf %57, %60 : vector<8x32xf32>
    %62 = arith.mulf %47, %54 : vector<8x1xf32>
    %63 = vector.broadcast %62 : vector<8x1xf32> to vector<8x32xf32>
    %64 = arith.mulf %63, %17 : vector<8x32xf32>
    %65 = arith.addf %61, %64 : vector<8x32xf32>
    %66 = arith.mulf %49, %54 : vector<8x1xf32>
    %67 = vector.broadcast %66 : vector<8x1xf32> to vector<8x32xf32>
    %68 = arith.mulf %67, %18 : vector<8x32xf32>
    %69 = arith.addf %65, %68 : vector<8x32xf32>
    %70 = arith.mulf %8, %11 : vector<8x32xf32>
    %cst_18 = arith.constant dense<0.000000e+00> : vector<8xf32>
    %71 = vector.multi_reduction <add>, %70, %cst_18 [1] : vector<8x32xf32> to vector<8xf32>
    %72 = vector.shape_cast %71 : vector<8xf32> to vector<8x1xf32>
    %cst_19 = arith.constant 0.0883883461 : f32
    %73 = vector.broadcast %cst_19 : f32 to vector<8x1xf32>
    %74 = arith.mulf %72, %73 : vector<8x1xf32>
    %75 = arith.mulf %8, %12 : vector<8x32xf32>
    %cst_20 = arith.constant dense<0.000000e+00> : vector<8xf32>
    %76 = vector.multi_reduction <add>, %75, %cst_20 [1] : vector<8x32xf32> to vector<8xf32>
    %77 = vector.shape_cast %76 : vector<8xf32> to vector<8x1xf32>
    %cst_21 = arith.constant 0.0883883461 : f32
    %78 = vector.broadcast %cst_21 : f32 to vector<8x1xf32>
    %79 = arith.mulf %77, %78 : vector<8x1xf32>
    %80 = arith.mulf %8, %13 : vector<8x32xf32>
    %cst_22 = arith.constant dense<0.000000e+00> : vector<8xf32>
    %81 = vector.multi_reduction <add>, %80, %cst_22 [1] : vector<8x32xf32> to vector<8xf32>
    %82 = vector.shape_cast %81 : vector<8xf32> to vector<8x1xf32>
    %cst_23 = arith.constant 0.0883883461 : f32
    %83 = vector.broadcast %cst_23 : f32 to vector<8x1xf32>
    %84 = arith.mulf %82, %83 : vector<8x1xf32>
    %85 = arith.mulf %8, %14 : vector<8x32xf32>
    %cst_24 = arith.constant dense<0.000000e+00> : vector<8xf32>
    %86 = vector.multi_reduction <add>, %85, %cst_24 [1] : vector<8x32xf32> to vector<8xf32>
    %87 = vector.shape_cast %86 : vector<8xf32> to vector<8x1xf32>
    %cst_25 = arith.constant 0.0883883461 : f32
    %88 = vector.broadcast %cst_25 : f32 to vector<8x1xf32>
    %89 = arith.mulf %87, %88 : vector<8x1xf32>
    %90 = arith.maximumf %74, %79 : vector<8x1xf32>
    %91 = arith.maximumf %90, %84 : vector<8x1xf32>
    %92 = arith.maximumf %91, %89 : vector<8x1xf32>
    %93 = arith.subf %74, %92 : vector<8x1xf32>
    %94 = math.exp %93 : vector<8x1xf32>
    %95 = arith.subf %79, %92 : vector<8x1xf32>
    %96 = math.exp %95 : vector<8x1xf32>
    %97 = arith.subf %84, %92 : vector<8x1xf32>
    %98 = math.exp %97 : vector<8x1xf32>
    %99 = arith.subf %89, %92 : vector<8x1xf32>
    %100 = math.exp %99 : vector<8x1xf32>
    %101 = arith.addf %94, %96 : vector<8x1xf32>
    %102 = arith.addf %101, %98 : vector<8x1xf32>
    %103 = arith.addf %102, %100 : vector<8x1xf32>
    %cst_26 = arith.constant 1.000000e+00 : f32
    %104 = vector.broadcast %cst_26 : f32 to vector<8x1xf32>
    %105 = arith.divf %104, %103 : vector<8x1xf32>
    %106 = arith.mulf %94, %105 : vector<8x1xf32>
    %107 = vector.broadcast %106 : vector<8x1xf32> to vector<8x32xf32>
    %108 = arith.mulf %107, %15 : vector<8x32xf32>
    %109 = arith.mulf %96, %105 : vector<8x1xf32>
    %110 = vector.broadcast %109 : vector<8x1xf32> to vector<8x32xf32>
    %111 = arith.mulf %110, %16 : vector<8x32xf32>
    %112 = arith.addf %108, %111 : vector<8x32xf32>
    %113 = arith.mulf %98, %105 : vector<8x1xf32>
    %114 = vector.broadcast %113 : vector<8x1xf32> to vector<8x32xf32>
    %115 = arith.mulf %114, %17 : vector<8x32xf32>
    %116 = arith.addf %112, %115 : vector<8x32xf32>
    %117 = arith.mulf %100, %105 : vector<8x1xf32>
    %118 = vector.broadcast %117 : vector<8x1xf32> to vector<8x32xf32>
    %119 = arith.mulf %118, %18 : vector<8x32xf32>
    %120 = arith.addf %116, %119 : vector<8x32xf32>
    %121 = arith.mulf %9, %11 : vector<8x32xf32>
    %cst_27 = arith.constant dense<0.000000e+00> : vector<8xf32>
    %122 = vector.multi_reduction <add>, %121, %cst_27 [1] : vector<8x32xf32> to vector<8xf32>
    %123 = vector.shape_cast %122 : vector<8xf32> to vector<8x1xf32>
    %cst_28 = arith.constant 0.0883883461 : f32
    %124 = vector.broadcast %cst_28 : f32 to vector<8x1xf32>
    %125 = arith.mulf %123, %124 : vector<8x1xf32>
    %126 = arith.mulf %9, %12 : vector<8x32xf32>
    %cst_29 = arith.constant dense<0.000000e+00> : vector<8xf32>
    %127 = vector.multi_reduction <add>, %126, %cst_29 [1] : vector<8x32xf32> to vector<8xf32>
    %128 = vector.shape_cast %127 : vector<8xf32> to vector<8x1xf32>
    %cst_30 = arith.constant 0.0883883461 : f32
    %129 = vector.broadcast %cst_30 : f32 to vector<8x1xf32>
    %130 = arith.mulf %128, %129 : vector<8x1xf32>
    %131 = arith.mulf %9, %13 : vector<8x32xf32>
    %cst_31 = arith.constant dense<0.000000e+00> : vector<8xf32>
    %132 = vector.multi_reduction <add>, %131, %cst_31 [1] : vector<8x32xf32> to vector<8xf32>
    %133 = vector.shape_cast %132 : vector<8xf32> to vector<8x1xf32>
    %cst_32 = arith.constant 0.0883883461 : f32
    %134 = vector.broadcast %cst_32 : f32 to vector<8x1xf32>
    %135 = arith.mulf %133, %134 : vector<8x1xf32>
    %136 = arith.mulf %9, %14 : vector<8x32xf32>
    %cst_33 = arith.constant dense<0.000000e+00> : vector<8xf32>
    %137 = vector.multi_reduction <add>, %136, %cst_33 [1] : vector<8x32xf32> to vector<8xf32>
    %138 = vector.shape_cast %137 : vector<8xf32> to vector<8x1xf32>
    %cst_34 = arith.constant 0.0883883461 : f32
    %139 = vector.broadcast %cst_34 : f32 to vector<8x1xf32>
    %140 = arith.mulf %138, %139 : vector<8x1xf32>
    %141 = arith.maximumf %125, %130 : vector<8x1xf32>
    %142 = arith.maximumf %141, %135 : vector<8x1xf32>
    %143 = arith.maximumf %142, %140 : vector<8x1xf32>
    %144 = arith.subf %125, %143 : vector<8x1xf32>
    %145 = math.exp %144 : vector<8x1xf32>
    %146 = arith.subf %130, %143 : vector<8x1xf32>
    %147 = math.exp %146 : vector<8x1xf32>
    %148 = arith.subf %135, %143 : vector<8x1xf32>
    %149 = math.exp %148 : vector<8x1xf32>
    %150 = arith.subf %140, %143 : vector<8x1xf32>
    %151 = math.exp %150 : vector<8x1xf32>
    %152 = arith.addf %145, %147 : vector<8x1xf32>
    %153 = arith.addf %152, %149 : vector<8x1xf32>
    %154 = arith.addf %153, %151 : vector<8x1xf32>
    %cst_35 = arith.constant 1.000000e+00 : f32
    %155 = vector.broadcast %cst_35 : f32 to vector<8x1xf32>
    %156 = arith.divf %155, %154 : vector<8x1xf32>
    %157 = arith.mulf %145, %156 : vector<8x1xf32>
    %158 = vector.broadcast %157 : vector<8x1xf32> to vector<8x32xf32>
    %159 = arith.mulf %158, %15 : vector<8x32xf32>
    %160 = arith.mulf %147, %156 : vector<8x1xf32>
    %161 = vector.broadcast %160 : vector<8x1xf32> to vector<8x32xf32>
    %162 = arith.mulf %161, %16 : vector<8x32xf32>
    %163 = arith.addf %159, %162 : vector<8x32xf32>
    %164 = arith.mulf %149, %156 : vector<8x1xf32>
    %165 = vector.broadcast %164 : vector<8x1xf32> to vector<8x32xf32>
    %166 = arith.mulf %165, %17 : vector<8x32xf32>
    %167 = arith.addf %163, %166 : vector<8x32xf32>
    %168 = arith.mulf %151, %156 : vector<8x1xf32>
    %169 = vector.broadcast %168 : vector<8x1xf32> to vector<8x32xf32>
    %170 = arith.mulf %169, %18 : vector<8x32xf32>
    %171 = arith.addf %167, %170 : vector<8x32xf32>
    %172 = arith.mulf %10, %11 : vector<8x32xf32>
    %cst_36 = arith.constant dense<0.000000e+00> : vector<8xf32>
    %173 = vector.multi_reduction <add>, %172, %cst_36 [1] : vector<8x32xf32> to vector<8xf32>
    %174 = vector.shape_cast %173 : vector<8xf32> to vector<8x1xf32>
    %cst_37 = arith.constant 0.0883883461 : f32
    %175 = vector.broadcast %cst_37 : f32 to vector<8x1xf32>
    %176 = arith.mulf %174, %175 : vector<8x1xf32>
    %177 = arith.mulf %10, %12 : vector<8x32xf32>
    %cst_38 = arith.constant dense<0.000000e+00> : vector<8xf32>
    %178 = vector.multi_reduction <add>, %177, %cst_38 [1] : vector<8x32xf32> to vector<8xf32>
    %179 = vector.shape_cast %178 : vector<8xf32> to vector<8x1xf32>
    %cst_39 = arith.constant 0.0883883461 : f32
    %180 = vector.broadcast %cst_39 : f32 to vector<8x1xf32>
    %181 = arith.mulf %179, %180 : vector<8x1xf32>
    %182 = arith.mulf %10, %13 : vector<8x32xf32>
    %cst_40 = arith.constant dense<0.000000e+00> : vector<8xf32>
    %183 = vector.multi_reduction <add>, %182, %cst_40 [1] : vector<8x32xf32> to vector<8xf32>
    %184 = vector.shape_cast %183 : vector<8xf32> to vector<8x1xf32>
    %cst_41 = arith.constant 0.0883883461 : f32
    %185 = vector.broadcast %cst_41 : f32 to vector<8x1xf32>
    %186 = arith.mulf %184, %185 : vector<8x1xf32>
    %187 = arith.mulf %10, %14 : vector<8x32xf32>
    %cst_42 = arith.constant dense<0.000000e+00> : vector<8xf32>
    %188 = vector.multi_reduction <add>, %187, %cst_42 [1] : vector<8x32xf32> to vector<8xf32>
    %189 = vector.shape_cast %188 : vector<8xf32> to vector<8x1xf32>
    %cst_43 = arith.constant 0.0883883461 : f32
    %190 = vector.broadcast %cst_43 : f32 to vector<8x1xf32>
    %191 = arith.mulf %189, %190 : vector<8x1xf32>
    %192 = arith.maximumf %176, %181 : vector<8x1xf32>
    %193 = arith.maximumf %192, %186 : vector<8x1xf32>
    %194 = arith.maximumf %193, %191 : vector<8x1xf32>
    %195 = arith.subf %176, %194 : vector<8x1xf32>
    %196 = math.exp %195 : vector<8x1xf32>
    %197 = arith.subf %181, %194 : vector<8x1xf32>
    %198 = math.exp %197 : vector<8x1xf32>
    %199 = arith.subf %186, %194 : vector<8x1xf32>
    %200 = math.exp %199 : vector<8x1xf32>
    %201 = arith.subf %191, %194 : vector<8x1xf32>
    %202 = math.exp %201 : vector<8x1xf32>
    %203 = arith.addf %196, %198 : vector<8x1xf32>
    %204 = arith.addf %203, %200 : vector<8x1xf32>
    %205 = arith.addf %204, %202 : vector<8x1xf32>
    %cst_44 = arith.constant 1.000000e+00 : f32
    %206 = vector.broadcast %cst_44 : f32 to vector<8x1xf32>
    %207 = arith.divf %206, %205 : vector<8x1xf32>
    %208 = arith.mulf %196, %207 : vector<8x1xf32>
    %209 = vector.broadcast %208 : vector<8x1xf32> to vector<8x32xf32>
    %210 = arith.mulf %209, %15 : vector<8x32xf32>
    %211 = arith.mulf %198, %207 : vector<8x1xf32>
    %212 = vector.broadcast %211 : vector<8x1xf32> to vector<8x32xf32>
    %213 = arith.mulf %212, %16 : vector<8x32xf32>
    %214 = arith.addf %210, %213 : vector<8x32xf32>
    %215 = arith.mulf %200, %207 : vector<8x1xf32>
    %216 = vector.broadcast %215 : vector<8x1xf32> to vector<8x32xf32>
    %217 = arith.mulf %216, %17 : vector<8x32xf32>
    %218 = arith.addf %214, %217 : vector<8x32xf32>
    %219 = arith.mulf %202, %207 : vector<8x1xf32>
    %220 = vector.broadcast %219 : vector<8x1xf32> to vector<8x32xf32>
    %221 = arith.mulf %220, %18 : vector<8x32xf32>
    %222 = arith.addf %218, %221 : vector<8x32xf32>
    %223 = tpu.concatenate %69, %120, %171, %222 in 1 : vector<8x32xf32>, vector<8x32xf32>, vector<8x32xf32>, vector<8x32xf32> -> vector<8x128xf32>
    %c0_45 = arith.constant 0 : index
    %c0_46 = arith.constant 0 : index
    %224 = vector.load %arg5[%c0_45, %c0_46] : memref<128x128xf32, #tpu.memory_space<vmem>>, vector<128x128xf32>
    %cst_47 = arith.constant dense<0.000000e+00> : vector<8x128xf32>
    %225 = tpu.matmul %223, %224, %cst_47 {dimension_numbers = #tpu.dot_dimension_numbers<[1], [0], [0], [1], [0, 0, 1, 1], [], []>} : vector<8x128xf32>, vector<128x128xf32>, vector<8x128xf32> -> vector<8x128xf32>
    %c0_48 = arith.constant 0 : index
    %c0_49 = arith.constant 0 : index
    %226 = vector.load %arg6[%c0_48, %c0_49] : memref<1x128xf32, #tpu.memory_space<vmem>>, vector<1x128xf32>
    %227 = vector.broadcast %226 : vector<1x128xf32> to vector<8x128xf32>
    %228 = arith.addf %225, %227 : vector<8x128xf32>
    %229 = arith.addf %228, %0 : vector<8x128xf32>
    %cst_50 = arith.constant dense<0.000000e+00> : vector<8xf32>
    %230 = vector.multi_reduction <add>, %229, %cst_50 [1] : vector<8x128xf32> to vector<8xf32>
    %231 = vector.shape_cast %230 : vector<8xf32> to vector<8x1xf32>
    %cst_51 = arith.constant 1.280000e+02 : f32
    %232 = vector.broadcast %cst_51 : f32 to vector<8x1xf32>
    %233 = arith.divf %231, %232 : vector<8x1xf32>
    %234 = vector.broadcast %233 : vector<8x1xf32> to vector<8x128xf32>
    %235 = arith.subf %229, %234 : vector<8x128xf32>
    %236 = vector.broadcast %233 : vector<8x1xf32> to vector<8x128xf32>
    %237 = arith.subf %229, %236 : vector<8x128xf32>
    %238 = arith.mulf %235, %237 : vector<8x128xf32>
    %cst_52 = arith.constant dense<0.000000e+00> : vector<8xf32>
    %239 = vector.multi_reduction <add>, %238, %cst_52 [1] : vector<8x128xf32> to vector<8xf32>
    %240 = vector.shape_cast %239 : vector<8xf32> to vector<8x1xf32>
    %cst_53 = arith.constant 1.280000e+02 : f32
    %241 = vector.broadcast %cst_53 : f32 to vector<8x1xf32>
    %242 = arith.divf %240, %241 : vector<8x1xf32>
    %243 = vector.broadcast %233 : vector<8x1xf32> to vector<8x128xf32>
    %244 = arith.subf %229, %243 : vector<8x128xf32>
    %cst_54 = arith.constant 9.99999974E-6 : f32
    %245 = vector.broadcast %cst_54 : f32 to vector<8x1xf32>
    %246 = arith.addf %242, %245 : vector<8x1xf32>
    %247 = math.rsqrt %246 : vector<8x1xf32>
    %248 = vector.broadcast %247 : vector<8x1xf32> to vector<8x128xf32>
    %249 = arith.mulf %244, %248 : vector<8x128xf32>
    %c0_55 = arith.constant 0 : index
    %c0_56 = arith.constant 0 : index
    %250 = vector.load %arg7[%c0_55, %c0_56] : memref<1x128xf32, #tpu.memory_space<vmem>>, vector<1x128xf32>
    %251 = vector.broadcast %250 : vector<1x128xf32> to vector<8x128xf32>
    %252 = arith.mulf %249, %251 : vector<8x128xf32>
    %c0_57 = arith.constant 0 : index
    %c0_58 = arith.constant 0 : index
    %253 = vector.load %arg8[%c0_57, %c0_58] : memref<1x128xf32, #tpu.memory_space<vmem>>, vector<1x128xf32>
    %254 = vector.broadcast %253 : vector<1x128xf32> to vector<8x128xf32>
    %255 = arith.addf %252, %254 : vector<8x128xf32>
    %c0_59 = arith.constant 0 : index
    %c0_60 = arith.constant 0 : index
    %256 = vector.load %arg9[%c0_59, %c0_60] : memref<8x128xf32, #tpu.memory_space<vmem>>, vector<8x128xf32>
    tpu.vector_store %arg9[%c0_59, %c0_60], %255 {strides = array<i32>} : memref<8x128xf32, #tpu.memory_space<vmem>>, vector<8x128xf32>,
    return
  }
  func.func @transform_0(%arg0: i32) -> (i32, i32) {
    %c0_i32 = arith.constant 0 : i32
    %c0_i32_0 = arith.constant 0 : i32
    return %arg0, %c0_i32 : i32, i32
  }
  func.func @transform_1(%arg0: i32) -> (i32, i32) {
    %c0_i32 = arith.constant 0 : i32
    %c0_i32_0 = arith.constant 0 : i32
    %c0_i32_1 = arith.constant 0 : i32
    return %c0_i32, %c0_i32_0 : i32, i32
  }
  func.func @transform_2(%arg0: i32) -> (i32, i32) {
    %c0_i32 = arith.constant 0 : i32
    %c0_i32_0 = arith.constant 0 : i32
    %c0_i32_1 = arith.constant 0 : i32
    return %c0_i32, %c0_i32_0 : i32, i32
  }
  func.func @transform_3(%arg0: i32) -> (i32, i32) {
    %c0_i32 = arith.constant 0 : i32
    %c0_i32_0 = arith.constant 0 : i32
    %c0_i32_1 = arith.constant 0 : i32
    return %c0_i32, %c0_i32_0 : i32, i32
  }
  func.func @transform_4(%arg0: i32) -> (i32, i32) {
    %c0_i32 = arith.constant 0 : i32
    %c0_i32_0 = arith.constant 0 : i32
    %c0_i32_1 = arith.constant 0 : i32
    return %c0_i32, %c0_i32_0 : i32, i32
  }
  func.func @transform_5(%arg0: i32) -> (i32, i32) {
    %c0_i32 = arith.constant 0 : i32
    %c0_i32_0 = arith.constant 0 : i32
    %c0_i32_1 = arith.constant 0 : i32
    return %c0_i32, %c0_i32_0 : i32, i32
  }
  func.func @transform_6(%arg0: i32) -> (i32, i32) {
    %c0_i32 = arith.constant 0 : i32
    %c0_i32_0 = arith.constant 0 : i32
    %c0_i32_1 = arith.constant 0 : i32
    return %c0_i32, %c0_i32_0 : i32, i32
  }
  func.func @transform_7(%arg0: i32) -> (i32, i32) {
    %c0_i32 = arith.constant 0 : i32
    %c0_i32_0 = arith.constant 0 : i32
    %c0_i32_1 = arith.constant 0 : i32
    return %c0_i32, %c0_i32_0 : i32, i32
  }
  func.func @transform_8(%arg0: i32) -> (i32, i32) {
    %c0_i32 = arith.constant 0 : i32
    %c0_i32_0 = arith.constant 0 : i32
    return %arg0, %c0_i32 : i32, i32
  }
}

</mosaic_0001>

<llo_original>
// kernel: tpu_custom_call.1
$region0: #{tpu_custom_call.1}
  #allocation0 [shape = 'u32[]', space=smem, size = 0x4, offset = 0x4, fixed_abs, tag = 'smem constant byte address 0x4 - core index']
  #allocation1 [shape = 'u32[72,128]{1,0:T(1,128)}', space=vmem, size = 0x9000, scoped, tag = 'internal scratch']
  %s0 = inlined_call_operand.hbm [shape: f32[16,128], index: 0, kind: input, shape index: {}]
  %s1 = inlined_call_operand.hbm [shape: f32[128,128], index: 1, kind: input, shape index: {}]
  %s2 = inlined_call_operand.hbm [shape: f32[128,128], index: 2, kind: input, shape index: {}]
  %s3 = inlined_call_operand.hbm [shape: f32[128,128], index: 3, kind: input, shape index: {}]
  %s4 = inlined_call_operand.hbm [shape: f32[128,128], index: 4, kind: input, shape index: {}]
  %s5 = inlined_call_operand.vmem [shape: f32[1,128], index: 5, kind: input, shape index: {}]
  %s6 = inlined_call_operand.vmem [shape: f32[1,128], index: 6, kind: input, shape index: {}]
  %s7 = inlined_call_operand.vmem [shape: f32[1,128], index: 7, kind: input, shape index: {}]
  %s8 = inlined_call_operand.hbm [shape: f32[16,128], index: 8, kind: output, shape index: {}]
  %s9 = sld [smem:[#allocation0]]
  $region85: #{tpu_custom_call.1} parent=0
    _
  %s11 = ssub.s32 1, %s9
  %s12 = scalar_select 0, %s11, %s9
  $region1: #{tpu_custom_call.1} parent=0
    #allocation2 [shape = 'u8[8192]{0}', space=vmem, size = 0x2000, scoped, tag = 'input window, operand 0']
    #allocation3 [shape = 's32[2]{0}', space=sflag, size = 0x8, scoped, tag = 'scoped memory for tpu_custom_call.1']
    #allocation4 [shape = 's32[2]{0}', space=sflag, size = 0x8, scoped, tag = 'scoped memory for tpu_custom_call.1']
    #allocation5 [shape = 'u8[65536]{0}', space=vmem, size = 0x10000, scoped, tag = 'input window, operand 1, single buffered']
    #allocation6 [shape = 's32[1]{0}', space=sflag, size = 0x4, scoped, tag = 'scoped memory for tpu_custom_call.1']
    #allocation7 [shape = 'u8[65536]{0}', space=vmem, size = 0x10000, scoped, tag = 'input window, operand 2, single buffered']
    #allocation8 [shape = 'u8[65536]{0}', space=vmem, size = 0x10000, scoped, tag = 'input window, operand 3, single buffered']
    #allocation9 [shape = 's32[1]{0}', space=sflag, size = 0x4, scoped, tag = 'scoped memory for tpu_custom_call.1']
    #allocation10 [shape = 'u8[65536]{0}', space=vmem, size = 0x10000, scoped, tag = 'input window, operand 4, single buffered']
    #allocation11 [shape = 'u8[8192]{0}', space=vmem, size = 0x2000, scoped, tag = 'output window, operand 0']
    %13 = vsyncpa [#allocation3], 0
    %s14 = scalar_lea.sflag [#allocation3], 1
    %15 = vsyncpa %s14, 0
    %16 = vsyncpa [#allocation6], 0
    %17 = vsyncpa [#allocation9], 0
    %18 = vsyncpa [#allocation4], 0
    %s19 = scalar_lea.sflag [#allocation4], 1
    %20 = vsyncpa %s19, 0
    loop: start=0, step=1, limit=4
    $region2: #{tpu_custom_call.1} parent=1 // loop_pre_header
      _
    $region3: #{tpu_custom_call.1} parent=1 // loop_header
      %s22 = sphi 0, %s26
      %p23 = scmp.ge.s32.totalorder %s22, 4
      %s32 = sphi 0, %s34
      %s35 = sphi 0, %s32
      %s36 = sphi 0, %s35
      %s52 = sphi 0, %s36
      %s56 = sphi 0, %s56
      %s58 = sphi 0, %s56
      %s59 = sphi 0, %s58
      %s73 = sphi 0, %s59
      %s77 = sphi 0, %s77
      %s79 = sphi 0, %s77
      %s80 = sphi 0, %s79
      %s94 = sphi 0, %s80
      %s98 = sphi 0, %s98
      %s100 = sphi 0, %s98
      %s101 = sphi 0, %s100
      %s115 = sphi 0, %s101
      %s119 = sphi 0, %s119
      %s121 = sphi 0, %s119
      %s122 = sphi 0, %s121
      %s136 = sphi 0, %s122
      %s140 = sphi 0, %s140
      %s142 = sphi 0, %s140
      %s143 = sphi 0, %s142
      %s157 = sphi 0, %s143
      %s161 = sphi 0, %s161
      %s163 = sphi 0, %s161
      %s164 = sphi 0, %s163
      %s178 = sphi 0, %s164
      %s182 = sphi 0, %s182
      %s184 = sphi 0, %s182
      %s185 = sphi 0, %s184
      %s199 = sphi 0, %s185
      %s205 = sphi 0, %s207
      %s208 = sphi 0, %s205
      %s209 = sphi 0, %s208
      %s225 = sphi 0, %s209
    $region4: #{tpu_custom_call.1} parent=1 // loop_header_branch
      %25 = sbr.rel (%p23) target = $region8
    $region5: #{tpu_custom_call.1} parent=1 // loop_body
      %s27 = ssub.s32 %s22, 1
      %s28 = ssub.s32 %s22, 2
      %s29 = sadd.s32 %s22, 1
      %s30 = ssub.s32 %s22, %s29
      %p31 = scmp.eq.s32.totalorder %s30, 0
      %s33 = sadd.s32 %s32, 1
      %s34 = scalar_select %p31, %s32, %s33
      %p37 = pneg %p31
      %p38 = scmp.eq.s32.totalorder %s22, 1
      %p39 = por %p37, %p38
      %p40 = scmp.ne.s32.totalorder %s32, %s35
      %p41 = scmp.eq.s32.totalorder %s22, 0
      %p42 = por %p40, %p41
      %p43 = scmp.ne.s32.totalorder %s32, %s35
      %p44 = scmp.eq.s32.totalorder %s27, 1
      %p45 = por %p43, %p44
      %p46 = scmp.ne.s32.totalorder %s35, %s36
      %p47 = scmp.eq.s32.totalorder %s27, 0
      %p48 = por %p46, %p47
      %p49 = scmp.ne.s32.totalorder %s35, %s36
      %p50 = scmp.eq.s32.totalorder %s28, 1
      %p51 = por %p49, %p50
      %p53 = scmp.ne.s32.totalorder %s36, %s52
      %p54 = scmp.eq.s32.totalorder %s28, 0
      %p55 = por %p53, %p54
      %s57 = sadd.s32 %s56, 1
      %p60 = scmp.eq.s32.totalorder %s22, 1
      %p61 = scmp.ne.s32.totalorder %s56, %s58
      %p62 = scmp.eq.s32.totalorder %s22, 0
      %p63 = por %p61, %p62
      %p64 = scmp.ne.s32.totalorder %s56, %s58
      %p65 = scmp.eq.s32.totalorder %s27, 1
      %p66 = por %p64, %p65
      %p67 = scmp.ne.s32.totalorder %s58, %s59
      %p68 = scmp.eq.s32.totalorder %s27, 0
      %p69 = por %p67, %p68
      %p70 = scmp.ne.s32.totalorder %s58, %s59
      %p71 = scmp.eq.s32.totalorder %s28, 1
      %p72 = por %p70, %p71
      %p74 = scmp.ne.s32.totalorder %s59, %s73
      %p75 = scmp.eq.s32.totalorder %s28, 0
      %p76 = por %p74, %p75
      %s78 = sadd.s32 %s77, 1
      %p81 = scmp.eq.s32.totalorder %s22, 1
      %p82 = scmp.ne.s32.totalorder %s77, %s79
      %p83 = scmp.eq.s32.totalorder %s22, 0
      %p84 = por %p82, %p83
      %p85 = scmp.ne.s32.totalorder %s77, %s79
      %p86 = scmp.eq.s32.totalorder %s27, 1
      %p87 = por %p85, %p86
      %p88 = scmp.ne.s32.totalorder %s79, %s80
      %p89 = scmp.eq.s32.totalorder %s27, 0
      %p90 = por %p88, %p89
      %p91 = scmp.ne.s32.totalorder %s79, %s80
      %p92 = scmp.eq.s32.totalorder %s28, 1
      %p93 = por %p91, %p92
      %p95 = scmp.ne.s32.totalorder %s80, %s94
      %p96 = scmp.eq.s32.totalorder %s28, 0
      %p97 = por %p95, %p96
      %s99 = sadd.s32 %s98, 1
      %p102 = scmp.eq.s32.totalorder %s22, 1
      %p103 = scmp.ne.s32.totalorder %s98, %s100
      %p104 = scmp.eq.s32.totalorder %s22, 0
      %p105 = por %p103, %p104
      %p106 = scmp.ne.s32.totalorder %s98, %s100
      %p107 = scmp.eq.s32.totalorder %s27, 1
      %p108 = por %p106, %p107
      %p109 = scmp.ne.s32.totalorder %s100, %s101
      %p110 = scmp.eq.s32.totalorder %s27, 0
      %p111 = por %p109, %p110
      %p112 = scmp.ne.s32.totalorder %s100, %s101
      %p113 = scmp.eq.s32.totalorder %s28, 1
      %p114 = por %p112, %p113
      %p116 = scmp.ne.s32.totalorder %s101, %s115
      %p117 = scmp.eq.s32.totalorder %s28, 0
      %p118 = por %p116, %p117
      %s120 = sadd.s32 %s119, 1
      %p123 = scmp.eq.s32.totalorder %s22, 1
      %p124 = scmp.ne.s32.totalorder %s119, %s121
      %p125 = scmp.eq.s32.totalorder %s22, 0
      %p126 = por %p124, %p125
      %p127 = scmp.ne.s32.totalorder %s119, %s121
      %p128 = scmp.eq.s32.totalorder %s27, 1
      %p129 = por %p127, %p128
      %p130 = scmp.ne.s32.totalorder %s121, %s122
      %p131 = scmp.eq.s32.totalorder %s27, 0
      %p132 = por %p130, %p131
      %p133 = scmp.ne.s32.totalorder %s121, %s122
      %p134 = scmp.eq.s32.totalorder %s28, 1
      %p135 = por %p133, %p134
      %p137 = scmp.ne.s32.totalorder %s122, %s136
      %p138 = scmp.eq.s32.totalorder %s28, 0
      %p139 = por %p137, %p138
      %s141 = sadd.s32 %s140, 1
      %p144 = scmp.eq.s32.totalorder %s22, 1
      %p145 = scmp.ne.s32.totalorder %s140, %s142
      %p146 = scmp.eq.s32.totalorder %s22, 0
      %p147 = por %p145, %p146
      %p148 = scmp.ne.s32.totalorder %s140, %s142
      %p149 = scmp.eq.s32.totalorder %s27, 1
      %p150 = por %p148, %p149
      %p151 = scmp.ne.s32.totalorder %s142, %s143
      %p152 = scmp.eq.s32.totalorder %s27, 0
      %p153 = por %p151, %p152
      %p154 = scmp.ne.s32.totalorder %s142, %s143
      %p155 = scmp.eq.s32.totalorder %s28, 1
      %p156 = por %p154, %p155
      %p158 = scmp.ne.s32.totalorder %s143, %s157
      %p159 = scmp.eq.s32.totalorder %s28, 0
      %p160 = por %p158, %p159
      %s162 = sadd.s32 %s161, 1
      %p165 = scmp.eq.s32.totalorder %s22, 1
      %p166 = scmp.ne.s32.totalorder %s161, %s163
      %p167 = scmp.eq.s32.totalorder %s22, 0
      %p168 = por %p166, %p167
      %p169 = scmp.ne.s32.totalorder %s161, %s163
      %p170 = scmp.eq.s32.totalorder %s27, 1
      %p171 = por %p169, %p170
      %p172 = scmp.ne.s32.totalorder %s163, %s164
      %p173 = scmp.eq.s32.totalorder %s27, 0
      %p174 = por %p172, %p173
      %p175 = scmp.ne.s32.totalorder %s163, %s164
      %p176 = scmp.eq.s32.totalorder %s28, 1
      %p177 = por %p175, %p176
      %p179 = scmp.ne.s32.totalorder %s164, %s178
      %p180 = scmp.eq.s32.totalorder %s28, 0
      %p181 = por %p179, %p180
      %s183 = sadd.s32 %s182, 1
      %p186 = scmp.eq.s32.totalorder %s22, 1
      %p187 = scmp.ne.s32.totalorder %s182, %s184
      %p188 = scmp.eq.s32.totalorder %s22, 0
      %p189 = por %p187, %p188
      %p190 = scmp.ne.s32.totalorder %s182, %s184
      %p191 = scmp.eq.s32.totalorder %s27, 1
      %p192 = por %p190, %p191
      %p193 = scmp.ne.s32.totalorder %s184, %s185
      %p194 = scmp.eq.s32.totalorder %s27, 0
      %p195 = por %p193, %p194
      %p196 = scmp.ne.s32.totalorder %s184, %s185
      %p197 = scmp.eq.s32.totalorder %s28, 1
      %p198 = por %p196, %p197
      %p200 = scmp.ne.s32.totalorder %s185, %s199
      %p201 = scmp.eq.s32.totalorder %s28, 0
      %p202 = por %p200, %p201
      %s203 = ssub.s32 %s22, %s29
      %p204 = scmp.eq.s32.totalorder %s203, 0
      %s206 = sadd.s32 %s205, 1
      %s207 = scalar_select %p204, %s205, %s206
      %p210 = pneg %p204
      %p211 = scmp.eq.s32.totalorder %s22, 1
      %p212 = por %p210, %p211
      %p213 = scmp.ne.s32.totalorder %s205, %s208
      %p214 = scmp.eq.s32.totalorder %s22, 0
      %p215 = por %p213, %p214
      %p216 = scmp.ne.s32.totalorder %s205, %s208
      %p217 = scmp.eq.s32.totalorder %s27, 1
      %p218 = por %p216, %p217
      %p219 = scmp.ne.s32.totalorder %s208, %s209
      %p220 = scmp.eq.s32.totalorder %s27, 0
      %p221 = por %p219, %p220
      %p222 = scmp.ne.s32.totalorder %s208, %s209
      %p223 = scmp.eq.s32.totalorder %s28, 1
      %p224 = por %p222, %p223
      %p226 = scmp.ne.s32.totalorder %s209, %s225
      %p227 = scmp.eq.s32.totalorder %s28, 0
      %p228 = por %p226, %p227
      %p229 = scmp.le.s32.totalorder 1, %s22
      %p230 = scmp.lt.s32.totalorder %s22, 3
      %p231 = pnand %p229, %p230
      %p232 = pneg %p231
      // Predicated region
      $region9: #{tpu_custom_call.1} parent=5 // pred_check
        _
      $region10: #{tpu_custom_call.1} parent=5 // pred_check_branch
        %234 = sbr.rel (%p231) target = $region12
      $region11: #{tpu_custom_call.1} parent=5 // pred_region
        %s235 = ssub.s32 %s22, 1
        // Predicated region
        $region13: #{tpu_custom_call.1} parent=11 // pred_check
          %p236 = pneg %p69
        $region14: #{tpu_custom_call.1} parent=11 // pred_check_branch
          %238 = sbr.rel (%p236) target = $region16
        $region15: #{tpu_custom_call.1} parent=11 // pred_region
          %240 = vsyncadd [#allocation6], 0
          %s241 = sshll.u32 %s1, 4
          %s242 = int_to_ptr.hbm [resolvable:$true] %s241
          %s243 = sshll.u32 [#allocation5], 4
          %s244 = int_to_ptr.vmem [resolvable:$true] %s243
          %249 = dma.hbm_to_vmem [thread:$0]  %s242, 2048, %s244, [#allocation6], 128, 128, 8
        $region16: #{tpu_custom_call.1} parent=11 // pred_fallthru
          _
        // Predicated region
        $region17: #{tpu_custom_call.1} parent=11 // pred_check
          %p250 = pneg %p90
        $region18: #{tpu_custom_call.1} parent=11 // pred_check_branch
          %252 = sbr.rel (%p250) target = $region20
        $region19: #{tpu_custom_call.1} parent=11 // pred_region
          %254 = vsyncadd [#allocation6], 0
          %s255 = sshll.u32 %s2, 4
          %s256 = int_to_ptr.hbm [resolvable:$true] %s255
          %s257 = sshll.u32 [#allocation7], 4
          %s258 = int_to_ptr.vmem [resolvable:$true] %s257
          %263 = dma.hbm_to_vmem [thread:$0]  %s256, 2048, %s258, [#allocation6], 128, 128, 8
        $region20: #{tpu_custom_call.1} parent=11 // pred_fallthru
          _
        // Predicated region
        $region21: #{tpu_custom_call.1} parent=11 // pred_check
          %p264 = pneg %p111
        $region22: #{tpu_custom_call.1} parent=11 // pred_check_branch
          %266 = sbr.rel (%p264) target = $region24
        $region23: #{tpu_custom_call.1} parent=11 // pred_region
          %268 = vsyncadd [#allocation9], 0
          %s269 = sshll.u32 %s3, 4
          %s270 = int_to_ptr.hbm [resolvable:$true] %s269
          %s271 = sshll.u32 [#allocation8], 4
          %s272 = int_to_ptr.vmem [resolvable:$true] %s271
          %277 = dma.hbm_to_vmem [thread:$0]  %s270, 2048, %s272, [#allocation9], 128, 128, 8
        $region24: #{tpu_custom_call.1} parent=11 // pred_fallthru
          _
        // Predicated region
        $region25: #{tpu_custom_call.1} parent=11 // pred_check
          %p278 = pneg %p132
        $region26: #{tpu_custom_call.1} parent=11 // pred_check_branch
          %280 = sbr.rel (%p278) target = $region28
        $region27: #{tpu_custom_call.1} parent=11 // pred_region
          %282 = vsyncadd [#allocation9], 0
          %s283 = sshll.u32 %s4, 4
          %s284 = int_to_ptr.hbm [resolvable:$true] %s283
          %s285 = sshll.u32 [#allocation10], 4
          %s286 = int_to_ptr.vmem [resolvable:$true] %s285
          %291 = dma.hbm_to_vmem [thread:$0]  %s284, 2048, %s286, [#allocation9], 128, 128, 8
        $region28: #{tpu_custom_call.1} parent=11 // pred_fallthru
          _
        // Predicated region
        $region29: #{tpu_custom_call.1} parent=11 // pred_check
          %p292 = pneg %p153
        $region30: #{tpu_custom_call.1} parent=11 // pred_check_branch
          %294 = sbr.rel (%p292) target = $region32
        $region31: #{tpu_custom_call.1} parent=11 // pred_region
          _
        $region32: #{tpu_custom_call.1} parent=11 // pred_fallthru
          _
        // Predicated region
        $region33: #{tpu_custom_call.1} parent=11 // pred_check
          %p295 = pneg %p174
        $region34: #{tpu_custom_call.1} parent=11 // pred_check_branch
          %297 = sbr.rel (%p295) target = $region36
        $region35: #{tpu_custom_call.1} parent=11 // pred_region
          _
        $region36: #{tpu_custom_call.1} parent=11 // pred_fallthru
          _
        // Predicated region
        $region37: #{tpu_custom_call.1} parent=11 // pred_check
          %p298 = pneg %p195
        $region38: #{tpu_custom_call.1} parent=11 // pred_check_branch
          %300 = sbr.rel (%p298) target = $region40
        $region39: #{tpu_custom_call.1} parent=11 // pred_region
          _
        $region40: #{tpu_custom_call.1} parent=11 // pred_fallthru
          _
      $region12: #{tpu_custom_call.1} parent=5 // pred_fallthru
        _
      %p301 = scmp.lt.s32.totalorder %s22, 2
      // Predicated region
      $region41: #{tpu_custom_call.1} parent=5 // pred_check
        %p302 = pneg %p301
      $region42: #{tpu_custom_call.1} parent=5 // pred_check_branch
        %304 = sbr.rel (%p302) target = $region44
      $region43: #{tpu_custom_call.1} parent=5 // pred_region
        // Predicated region
        $region45: #{tpu_custom_call.1} parent=43 // pred_check
          %p305 = pneg %p42
        $region46: #{tpu_custom_call.1} parent=43 // pred_check_branch
          %307 = sbr.rel (%p305) target = $region48
        $region47: #{tpu_custom_call.1} parent=43 // pred_region
          %s308 = sand.u32 %s32, 1
          %s309 = scalar_lea.sflag [#allocation3], %s308
          %s310 = sand.u32 %s32, 1
          %s311 = smul.addr %s310, 8
          %s312 = scalar_lea.vmem [#allocation2], %s311
          %314 = vsyncadd %s309, 0
          %s315 = smul.addr %s22, 8
          %s316 = scalar_lea.hbm %s0, %s315
          %s318 = sshll.u32 %s316, 4
          %s319 = int_to_ptr.hbm [resolvable:$true] %s318
          %s320 = sshll.u32 %s312, 4
          %s321 = int_to_ptr.vmem [resolvable:$true] %s320
          %323 = dma.hbm_to_vmem [thread:$0]  %s319, 128, %s321, %s309
        $region48: #{tpu_custom_call.1} parent=43 // pred_fallthru
          _
      $region44: #{tpu_custom_call.1} parent=5 // pred_fallthru
        _
      %p324 = scmp.le.s32.totalorder 1, %s22
      %p325 = scmp.lt.s32.totalorder %s22, 3
      %p326 = pnand %p324, %p325
      %p327 = pneg %p326
      // Predicated region
      $region49: #{tpu_custom_call.1} parent=5 // pred_check
        _
      $region50: #{tpu_custom_call.1} parent=5 // pred_check_branch
        %329 = sbr.rel (%p326) target = $region52
      $region51: #{tpu_custom_call.1} parent=5 // pred_region
        %s330 = ssub.s32 %s22, 1
        %s331 = sand.u32 %s35, 1
        %s332 = scalar_lea.sflag [#allocation3], %s331
        %s333 = sand.u32 %s35, 1
        %s334 = smul.addr %s333, 8
        %s335 = scalar_lea.vmem [#allocation2], %s334
        // Predicated region
        $region53: #{tpu_custom_call.1} parent=51 // pred_check
          %p336 = pneg %p48
        $region54: #{tpu_custom_call.1} parent=51 // pred_check_branch
          %338 = sbr.rel (%p336) target = $region56
        $region55: #{tpu_custom_call.1} parent=51 // pred_region
          %340 = dma.done %s332, 128
        $region56: #{tpu_custom_call.1} parent=51 // pred_fallthru
          _
        // Predicated region
        $region57: #{tpu_custom_call.1} parent=51 // pred_check
          %p341 = pneg %p69
        $region58: #{tpu_custom_call.1} parent=51 // pred_check_branch
          %343 = sbr.rel (%p341) target = $region60
        $region59: #{tpu_custom_call.1} parent=51 // pred_region
          %345 = dma.done [#allocation6], 2048
        $region60: #{tpu_custom_call.1} parent=51 // pred_fallthru
          _
        // Predicated region
        $region61: #{tpu_custom_call.1} parent=51 // pred_check
          %p346 = pneg %p90
        $region62: #{tpu_custom_call.1} parent=51 // pred_check_branch
          %348 = sbr.rel (%p346) target = $region64
        $region63: #{tpu_custom_call.1} parent=51 // pred_region
          %350 = dma.done [#allocation6], 2048
        $region64: #{tpu_custom_call.1} parent=51 // pred_fallthru
          _
        // Predicated region
        $region65: #{tpu_custom_call.1} parent=51 // pred_check
          %p351 = pneg %p111
        $region66: #{tpu_custom_call.1} parent=51 // pred_check_branch
          %353 = sbr.rel (%p351) target = $region68
        $region67: #{tpu_custom_call.1} parent=51 // pred_region
          %355 = dma.done [#allocation9], 2048
        $region68: #{tpu_custom_call.1} parent=51 // pred_fallthru
          _
        // Predicated region
        $region69: #{tpu_custom_call.1} parent=51 // pred_check
          %p356 = pneg %p132
        $region70: #{tpu_custom_call.1} parent=51 // pred_check_branch
          %358 = sbr.rel (%p356) target = $region72
        $region71: #{tpu_custom_call.1} parent=51 // pred_region
          %360 = dma.done [#allocation9], 2048
        $region72: #{tpu_custom_call.1} parent=51 // pred_fallthru
          _
        %s361 = sand.u32 %s35, 1
        %s362 = scalar_lea.sflag [#allocation3], %s361
        %s363 = sand.u32 %s35, 1
        %s364 = smul.addr %s363, 8
        %s365 = scalar_lea.vmem [#allocation2], %s364
        %p366 = pneg %p48
        %p367 = pneg %p45
        %p368 = pneg %p69
        %p369 = pneg %p66
        %p370 = pneg %p90
        %p371 = pneg %p87
        %p372 = pneg %p111
        %p373 = pneg %p108
        %p374 = pneg %p132
        %p375 = pneg %p129
        %p376 = pneg %p153
        %p377 = pneg %p150
        %p378 = pneg %p174
        %p379 = pneg %p171
        %p380 = pneg %p195
        %p381 = pneg %p192
        %p382 = pneg %p221
        %p383 = pneg %p218
        %s384 = sand.u32 %s208, 1
        %s385 = scalar_lea.sflag [#allocation4], %s384
        %s386 = sand.u32 %s208, 1
        %s387 = smul.addr %s386, 8
        %s388 = scalar_lea.vmem [#allocation11], %s387
        %v389 = vld [vmem:[%s335] sm:$0xff]
        %v390 = vld [vmem:[#allocation5] sm:$0xff]
        %v391 = vld [vmem:[#allocation5 + $0x8] sm:$0xff]
        %v392 = vld [vmem:[#allocation5 + $0x10] sm:$0xff]
        %v393 = vld [vmem:[#allocation5 + $0x18] sm:$0xff]
        %v394 = vld [vmem:[#allocation5 + $0x20] sm:$0xff]
        %v395 = vld [vmem:[#allocation5 + $0x28] sm:$0xff]
        %v396 = vld [vmem:[#allocation5 + $0x30] sm:$0xff]
        %v397 = vld [vmem:[#allocation5 + $0x38] sm:$0xff]
        %v398 = vld [vmem:[#allocation5 + $0x40] sm:$0xff]
        %v399 = vld [vmem:[#allocation5 + $0x48] sm:$0xff]
        %v400 = vld [vmem:[#allocation5 + $0x50] sm:$0xff]
        %v401 = vld [vmem:[#allocation5 + $0x58] sm:$0xff]
        %v402 = vld [vmem:[#allocation5 + $0x60] sm:$0xff]
        %v403 = vld [vmem:[#allocation5 + $0x68] sm:$0xff]
        %v404 = vld [vmem:[#allocation5 + $0x70] sm:$0xff]
        %v405 = vld [vmem:[#allocation5 + $0x78] sm:$0xff]
        %406 = vmatpush.msra.mxu0 %v405
        %407 = vmatpush.msra.mxu0 %v404
        %408 = vmatpush.msra.mxu0 %v403
        %409 = vmatpush.msra.mxu0 %v402
        %410 = vmatpush.msra.mxu0 %v401
        %411 = vmatpush.msra.mxu0 %v400
        %412 = vmatpush.msra.mxu0 %v399
        %413 = vmatpush.msra.mxu0 %v398
        %414 = vmatpush.msra.mxu0 %v397
        %415 = vmatpush.msra.mxu0 %v396
        %416 = vmatpush.msra.mxu0 %v395
        %417 = vmatpush.msra.mxu0 %v394
        %418 = vmatpush.msra.mxu0 %v393
        %419 = vmatpush.msra.mxu0 %v392
        %420 = vmatpush.msra.mxu0 %v391
        %421 = vmatpush.msra.mxu0 %v390
        %422 = vmatmul.f32.gmra.mxu0 %v389
        %v423 = vpop.f32.mrf.mxu0
        %v424 = vadd.f32 0.0, %v423
        %425 = vdwg.mxu0
        %v426 = vld [vmem:[#allocation7] sm:$0xff]
        %v427 = vld [vmem:[#allocation7 + $0x8] sm:$0xff]
        %v428 = vld [vmem:[#allocation7 + $0x10] sm:$0xff]
        %v429 = vld [vmem:[#allocation7 + $0x18] sm:$0xff]
        %v430 = vld [vmem:[#allocation7 + $0x20] sm:$0xff]
        %v431 = vld [vmem:[#allocation7 + $0x28] sm:$0xff]
        %v432 = vld [vmem:[#allocation7 + $0x30] sm:$0xff]
        %v433 = vld [vmem:[#allocation7 + $0x38] sm:$0xff]
        %v434 = vld [vmem:[#allocation7 + $0x40] sm:$0xff]
        %v435 = vld [vmem:[#allocation7 + $0x48] sm:$0xff]
        %v436 = vld [vmem:[#allocation7 + $0x50] sm:$0xff]
        %v437 = vld [vmem:[#allocation7 + $0x58] sm:$0xff]
        %v438 = vld [vmem:[#allocation7 + $0x60] sm:$0xff]
        %v439 = vld [vmem:[#allocation7 + $0x68] sm:$0xff]
        %v440 = vld [vmem:[#allocation7 + $0x70] sm:$0xff]
        %v441 = vld [vmem:[#allocation7 + $0x78] sm:$0xff]
        %442 = vmatpush.msra.mxu0 %v441
        %443 = vmatpush.msra.mxu0 %v440
        %444 = vmatpush.msra.mxu0 %v439
        %445 = vmatpush.msra.mxu0 %v438
        %446 = vmatpush.msra.mxu0 %v437
        %447 = vmatpush.msra.mxu0 %v436
        %448 = vmatpush.msra.mxu0 %v435
        %449 = vmatpush.msra.mxu0 %v434
        %450 = vmatpush.msra.mxu0 %v433
        %451 = vmatpush.msra.mxu0 %v432
        %452 = vmatpush.msra.mxu0 %v431
        %453 = vmatpush.msra.mxu0 %v430
        %454 = vmatpush.msra.mxu0 %v429
        %455 = vmatpush.msra.mxu0 %v428
        %456 = vmatpush.msra.mxu0 %v427
        %457 = vmatpush.msra.mxu0 %v426
        %458 = vmatmul.f32.gmra.mxu0 %v389
        %v459 = vpop.f32.mrf.mxu0
        %v460 = vadd.f32 0.0, %v459
        %461 = vdwg.mxu0
        %v462 = vld [vmem:[#allocation8] sm:$0xff]
        %v463 = vld [vmem:[#allocation8 + $0x8] sm:$0xff]
        %v464 = vld [vmem:[#allocation8 + $0x10] sm:$0xff]
        %v465 = vld [vmem:[#allocation8 + $0x18] sm:$0xff]
        %v466 = vld [vmem:[#allocation8 + $0x20] sm:$0xff]
        %v467 = vld [vmem:[#allocation8 + $0x28] sm:$0xff]
        %v468 = vld [vmem:[#allocation8 + $0x30] sm:$0xff]
        %v469 = vld [vmem:[#allocation8 + $0x38] sm:$0xff]
        %v470 = vld [vmem:[#allocation8 + $0x40] sm:$0xff]
        %v471 = vld [vmem:[#allocation8 + $0x48] sm:$0xff]
        %v472 = vld [vmem:[#allocation8 + $0x50] sm:$0xff]
        %v473 = vld [vmem:[#allocation8 + $0x58] sm:$0xff]
        %v474 = vld [vmem:[#allocation8 + $0x60] sm:$0xff]
        %v475 = vld [vmem:[#allocation8 + $0x68] sm:$0xff]
        %v476 = vld [vmem:[#allocation8 + $0x70] sm:$0xff]
        %v477 = vld [vmem:[#allocation8 + $0x78] sm:$0xff]
        %478 = vmatpush.msra.mxu0 %v477
        %479 = vmatpush.msra.mxu0 %v476
        %480 = vmatpush.msra.mxu0 %v475
        %481 = vmatpush.msra.mxu0 %v474
        %482 = vmatpush.msra.mxu0 %v473
        %483 = vmatpush.msra.mxu0 %v472
        %484 = vmatpush.msra.mxu0 %v471
        %485 = vmatpush.msra.mxu0 %v470
        %486 = vmatpush.msra.mxu0 %v469
        %487 = vmatpush.msra.mxu0 %v468
        %488 = vmatpush.msra.mxu0 %v467
        %489 = vmatpush.msra.mxu0 %v466
        %490 = vmatpush.msra.mxu0 %v465
        %491 = vmatpush.msra.mxu0 %v464
        %492 = vmatpush.msra.mxu0 %v463
        %493 = vmatpush.msra.mxu0 %v462
        %494 = vmatmul.f32.gmra.mxu0 %v389
        %v495 = vpop.f32.mrf.mxu0
        %v496 = vadd.f32 0.0, %v495
        %497 = vdwg.mxu0
        %v498 = vmul.f32 %v424, %v460
        %vm499 = vcmask 261120
        %v500 = vsel %vm499, %v498, 0.0
        %501 = vadd.xlane.f32.xlu0 %v500
        %v502 = vpop.xlane.xlu0 %501
        %v503 = vmul.f32 %v502, 0.088388346
        %505 = vrot.lane.b32.xlu0 %v460, 96
        %v506 = vpop.permute.xlu0 %505
        %v508 = vmul.f32 %v424, %v506
        %v509 = vsel %vm499, %v508, 0.0
        %510 = vadd.xlane.f32.xlu0 %v509
        %v511 = vpop.xlane.xlu0 %510
        %v512 = vmul.f32 %v511, 0.088388346
        %513 = vrot.lane.b32.xlu0 %v460, 64
        %v514 = vpop.permute.xlu0 %513
        %v516 = vmul.f32 %v424, %v514
        %v517 = vsel %vm499, %v516, 0.0
        %518 = vadd.xlane.f32.xlu0 %v517
        %v519 = vpop.xlane.xlu0 %518
        %v520 = vmul.f32 %v519, 0.088388346
        %521 = vrot.lane.b32.xlu0 %v460, 32
        %v522 = vpop.permute.xlu0 %521
        %v524 = vmul.f32 %v424, %v522
        %v525 = vsel %vm499, %v524, 0.0
        %526 = vadd.xlane.f32.xlu0 %v525
        %v527 = vpop.xlane.xlu0 %526
        %v528 = vmul.f32 %v527, 0.088388346
        %v529 = vmax.f32 %v503, %v512
        %v530 = vmax.f32 %v529, %v520
        %v531 = vmax.f32 %v530, %v528
        %v532 = vsub.f32 %v503, %v531
        %v533 = vmul.f32 %v532, 1.442695
        %v534 = vpow.pop %v533
        %v535 = vsub.f32 %v512, %v531
        %v536 = vmul.f32 %v535, 1.442695
        %v537 = vpow.pop %v536
        %v538 = vsub.f32 %v520, %v531
        %v539 = vmul.f32 %v538, 1.442695
        %v540 = vpow.pop %v539
        %v541 = vsub.f32 %v528, %v531
        %v542 = vmul.f32 %v541, 1.442695
        %v543 = vpow.pop %v542
        %v544 = vadd.f32 %v534, %v537
        %v545 = vadd.f32 %v544, %v540
        %v546 = vadd.f32 %v545, %v543
        %v547 = vrcp.pop %v546
        %v548 = vmul.f32 %v546, %v547
        %v549 = vsub.f32 1.0, %v548
        %v550 = vmul.f32 %v547, %v549
        %v551 = vadd.f32 %v547, %v550
        %vm552 = vweird.f32 %v546
        %vm553 = vweird.f32 %v547
        %vm554 = vmor %vm552, %vm553
        %v555 = vsel %vm554, %v547, %v551
        %v556 = vand.u32 2147483647, %v546
        %vm557 = vcmp.eq.f32.partialorder %v556, 8.507059e+37
        %v558 = vand.u32 %v546, 2147483648
        %v559 = vor.u32 1.1754944e-38, %v558
        %v560 = vsel %vm557, %v559, %v555
        %v561 = vmul.f32 1.0, %v560
        %v562 = vmul.f32 %v534, %v561
        %v563 = vmul.f32 %v562, %v496
        %v564 = vmul.f32 %v537, %v561
        %v565 = vmul.f32 %v564, %v496
        %567 = vrot.lane.b32.xlu0 %v565, 96
        %v568 = vpop.permute.xlu0 %567
        %v570 = vadd.f32 %v563, %v568
        %v571 = vmul.f32 %v540, %v561
        %v572 = vmul.f32 %v571, %v496
        %574 = vrot.lane.b32.xlu0 %v572, 64
        %v575 = vpop.permute.xlu0 %574
        %v577 = vadd.f32 %v570, %v575
        %v578 = vmul.f32 %v543, %v561
        %v579 = vmul.f32 %v578, %v496
        %581 = vrot.lane.b32.xlu0 %v579, 32
        %v582 = vpop.permute.xlu0 %581
        %v584 = vadd.f32 %v577, %v582
        %586 = vrot.lane.b32.xlu0 %v524, 96
        %v587 = vpop.permute.xlu0 %586
        %v589 = vsel %vm499, %v587, 0.0
        %590 = vadd.xlane.f32.xlu0 %v589
        %v591 = vpop.xlane.xlu0 %590
        %v592 = vmul.f32 %v591, 0.088388346
        %594 = vrot.lane.b32.xlu0 %v498, 96
        %v595 = vpop.permute.xlu0 %594
        %v597 = vsel %vm499, %v595, 0.0
        %598 = vadd.xlane.f32.xlu0 %v597
        %v599 = vpop.xlane.xlu0 %598
        %v600 = vmul.f32 %v599, 0.088388346
        %602 = vrot.lane.b32.xlu0 %v508, 96
        %v603 = vpop.permute.xlu0 %602
        %v605 = vsel %vm499, %v603, 0.0
        %606 = vadd.xlane.f32.xlu0 %v605
        %v607 = vpop.xlane.xlu0 %606
        %v608 = vmul.f32 %v607, 0.088388346
        %610 = vrot.lane.b32.xlu0 %v516, 96
        %v611 = vpop.permute.xlu0 %610
        %v613 = vsel %vm499, %v611, 0.0
        %614 = vadd.xlane.f32.xlu0 %v613
        %v615 = vpop.xlane.xlu0 %614
        %v616 = vmul.f32 %v615, 0.088388346
        %v617 = vmax.f32 %v592, %v600
        %v618 = vmax.f32 %v617, %v608
        %v619 = vmax.f32 %v618, %v616
        %v620 = vsub.f32 %v592, %v619
        %v621 = vmul.f32 %v620, 1.442695
        %v622 = vpow.pop %v621
        %v623 = vsub.f32 %v600, %v619
        %v624 = vmul.f32 %v623, 1.442695
        %v625 = vpow.pop %v624
        %v626 = vsub.f32 %v608, %v619
        %v627 = vmul.f32 %v626, 1.442695
        %v628 = vpow.pop %v627
        %v629 = vsub.f32 %v616, %v619
        %v630 = vmul.f32 %v629, 1.442695
        %v631 = vpow.pop %v630
        %v632 = vadd.f32 %v622, %v625
        %v633 = vadd.f32 %v632, %v628
        %v634 = vadd.f32 %v633, %v631
        %v635 = vrcp.pop %v634
        %v636 = vmul.f32 %v634, %v635
        %v637 = vsub.f32 1.0, %v636
        %v638 = vmul.f32 %v635, %v637
        %v639 = vadd.f32 %v635, %v638
        %vm640 = vweird.f32 %v634
        %vm641 = vweird.f32 %v635
        %vm642 = vmor %vm640, %vm641
        %v643 = vsel %vm642, %v635, %v639
        %v644 = vand.u32 2147483647, %v634
        %vm645 = vcmp.eq.f32.partialorder %v644, 8.507059e+37
        %v646 = vand.u32 %v634, 2147483648
        %v647 = vor.u32 1.1754944e-38, %v646
        %v648 = vsel %vm645, %v647, %v643
        %v649 = vmul.f32 1.0, %v648
        %v650 = vmul.f32 %v622, %v649
        %v651 = vmul.f32 %v650, %v496
        %v652 = vmul.f32 %v625, %v649
        %v653 = vmul.f32 %v652, %v496
        %655 = vrot.lane.b32.xlu0 %v653, 96
        %v656 = vpop.permute.xlu0 %655
        %v658 = vadd.f32 %v651, %v656
        %v659 = vmul.f32 %v628, %v649
        %v660 = vmul.f32 %v659, %v496
        %662 = vrot.lane.b32.xlu0 %v660, 64
        %v663 = vpop.permute.xlu0 %662
        %v665 = vadd.f32 %v658, %v663
        %v666 = vmul.f32 %v631, %v649
        %v667 = vmul.f32 %v666, %v496
        %669 = vrot.lane.b32.xlu0 %v667, 32
        %v670 = vpop.permute.xlu0 %669
        %v672 = vadd.f32 %v665, %v670
        %673 = vrot.lane.b32.xlu0 %v516, 64
        %v674 = vpop.permute.xlu0 %673
        %v676 = vsel %vm499, %v674, 0.0
        %677 = vadd.xlane.f32.xlu0 %v676
        %v678 = vpop.xlane.xlu0 %677
        %v679 = vmul.f32 %v678, 0.088388346
        %680 = vrot.lane.b32.xlu0 %v524, 64
        %v681 = vpop.permute.xlu0 %680
        %v683 = vsel %vm499, %v681, 0.0
        %684 = vadd.xlane.f32.xlu0 %v683
        %v685 = vpop.xlane.xlu0 %684
        %v686 = vmul.f32 %v685, 0.088388346
        %687 = vrot.lane.b32.xlu0 %v498, 64
        %v688 = vpop.permute.xlu0 %687
        %v690 = vsel %vm499, %v688, 0.0
        %691 = vadd.xlane.f32.xlu0 %v690
        %v692 = vpop.xlane.xlu0 %691
        %v693 = vmul.f32 %v692, 0.088388346
        %694 = vrot.lane.b32.xlu0 %v508, 64
        %v695 = vpop.permute.xlu0 %694
        %v697 = vsel %vm499, %v695, 0.0
        %698 = vadd.xlane.f32.xlu0 %v697
        %v699 = vpop.xlane.xlu0 %698
        %v700 = vmul.f32 %v699, 0.088388346
        %v701 = vmax.f32 %v679, %v686
        %v702 = vmax.f32 %v701, %v693
        %v703 = vmax.f32 %v702, %v700
        %v704 = vsub.f32 %v679, %v703
        %v705 = vmul.f32 %v704, 1.442695
        %v706 = vpow.pop %v705
        %v707 = vsub.f32 %v686, %v703
        %v708 = vmul.f32 %v707, 1.442695
        %v709 = vpow.pop %v708
        %v710 = vsub.f32 %v693, %v703
        %v711 = vmul.f32 %v710, 1.442695
        %v712 = vpow.pop %v711
        %v713 = vsub.f32 %v700, %v703
        %v714 = vmul.f32 %v713, 1.442695
        %v715 = vpow.pop %v714
        %v716 = vadd.f32 %v706, %v709
        %v717 = vadd.f32 %v716, %v712
        %v718 = vadd.f32 %v717, %v715
        %v719 = vrcp.pop %v718
        %v720 = vmul.f32 %v718, %v719
        %v721 = vsub.f32 1.0, %v720
        %v722 = vmul.f32 %v719, %v721
        %v723 = vadd.f32 %v719, %v722
        %vm724 = vweird.f32 %v718
        %vm725 = vweird.f32 %v719
        %vm726 = vmor %vm724, %vm725
        %v727 = vsel %vm726, %v719, %v723
        %v728 = vand.u32 2147483647, %v718
        %vm729 = vcmp.eq.f32.partialorder %v728, 8.507059e+37
        %v730 = vand.u32 %v718, 2147483648
        %v731 = vor.u32 1.1754944e-38, %v730
        %v732 = vsel %vm729, %v731, %v727
        %v733 = vmul.f32 1.0, %v732
        %v734 = vmul.f32 %v706, %v733
        %v735 = vmul.f32 %v734, %v496
        %v736 = vmul.f32 %v709, %v733
        %v737 = vmul.f32 %v736, %v496
        %739 = vrot.lane.b32.xlu0 %v737, 96
        %v740 = vpop.permute.xlu0 %739
        %v742 = vadd.f32 %v735, %v740
        %v743 = vmul.f32 %v712, %v733
        %v744 = vmul.f32 %v743, %v496
        %746 = vrot.lane.b32.xlu0 %v744, 64
        %v747 = vpop.permute.xlu0 %746
        %v749 = vadd.f32 %v742, %v747
        %v750 = vmul.f32 %v715, %v733
        %v751 = vmul.f32 %v750, %v496
        %753 = vrot.lane.b32.xlu0 %v751, 32
        %v754 = vpop.permute.xlu0 %753
        %v756 = vadd.f32 %v749, %v754
        %757 = vrot.lane.b32.xlu0 %v508, 32
        %v758 = vpop.permute.xlu0 %757
        %v760 = vsel %vm499, %v758, 0.0
        %761 = vadd.xlane.f32.xlu0 %v760
        %v762 = vpop.xlane.xlu0 %761
        %v763 = vmul.f32 %v762, 0.088388346
        %764 = vrot.lane.b32.xlu0 %v516, 32
        %v765 = vpop.permute.xlu0 %764
        %v767 = vsel %vm499, %v765, 0.0
        %768 = vadd.xlane.f32.xlu0 %v767
        %v769 = vpop.xlane.xlu0 %768
        %v770 = vmul.f32 %v769, 0.088388346
        %771 = vrot.lane.b32.xlu0 %v524, 32
        %v772 = vpop.permute.xlu0 %771
        %v774 = vsel %vm499, %v772, 0.0
        %775 = vadd.xlane.f32.xlu0 %v774
        %v776 = vpop.xlane.xlu0 %775
        %v777 = vmul.f32 %v776, 0.088388346
        %778 = vrot.lane.b32.xlu0 %v498, 32
        %v779 = vpop.permute.xlu0 %778
        %v781 = vsel %vm499, %v779, 0.0
        %782 = vadd.xlane.f32.xlu0 %v781
        %v783 = vpop.xlane.xlu0 %782
        %v784 = vmul.f32 %v783, 0.088388346
        %v785 = vmax.f32 %v763, %v770
        %v786 = vmax.f32 %v785, %v777
        %v787 = vmax.f32 %v786, %v784
        %v788 = vsub.f32 %v763, %v787
        %v789 = vmul.f32 %v788, 1.442695
        %v790 = vpow.pop %v789
        %v791 = vsub.f32 %v770, %v787
        %v792 = vmul.f32 %v791, 1.442695
        %v793 = vpow.pop %v792
        %v794 = vsub.f32 %v777, %v787
        %v795 = vmul.f32 %v794, 1.442695
        %v796 = vpow.pop %v795
        %v797 = vsub.f32 %v784, %v787
        %v798 = vmul.f32 %v797, 1.442695
        %v799 = vpow.pop %v798
        %v800 = vadd.f32 %v790, %v793
        %v801 = vadd.f32 %v800, %v796
        %v802 = vadd.f32 %v801, %v799
        %v803 = vrcp.pop %v802
        %v804 = vmul.f32 %v802, %v803
        %v805 = vsub.f32 1.0, %v804
        %v806 = vmul.f32 %v803, %v805
        %v807 = vadd.f32 %v803, %v806
        %vm808 = vweird.f32 %v802
        %vm809 = vweird.f32 %v803
        %vm810 = vmor %vm808, %vm809
        %v811 = vsel %vm810, %v803, %v807
        %v812 = vand.u32 2147483647, %v802
        %vm813 = vcmp.eq.f32.partialorder %v812, 8.507059e+37
        %v814 = vand.u32 %v802, 2147483648
        %v815 = vor.u32 1.1754944e-38, %v814
        %v816 = vsel %vm813, %v815, %v811
        %v817 = vmul.f32 1.0, %v816
        %v818 = vmul.f32 %v790, %v817
        %v819 = vmul.f32 %v818, %v496
        %v820 = vmul.f32 %v793, %v817
        %v821 = vmul.f32 %v820, %v496
        %823 = vrot.lane.b32.xlu0 %v821, 96
        %v824 = vpop.permute.xlu0 %823
        %v826 = vadd.f32 %v819, %v824
        %v827 = vmul.f32 %v796, %v817
        %v828 = vmul.f32 %v827, %v496
        %830 = vrot.lane.b32.xlu0 %v828, 64
        %v831 = vpop.permute.xlu0 %830
        %v833 = vadd.f32 %v826, %v831
        %v834 = vmul.f32 %v799, %v817
        %v835 = vmul.f32 %v834, %v496
        %837 = vrot.lane.b32.xlu0 %v835, 32
        %v838 = vpop.permute.xlu0 %837
        %v840 = vadd.f32 %v833, %v838
        %842 = vrot.lane.b32.xlu0 %v672, 32
        %v843 = vpop.permute.xlu0 %842
        %846 = vrot.lane.b32.xlu0 %v756, 64
        %v847 = vpop.permute.xlu0 %846
        %850 = vrot.lane.b32.xlu0 %v840, 96
        %v851 = vpop.permute.xlu0 %850
        %v853 = vsel %vm499, %v584, %v843
        %vm854 = vcmask 523264
        %v855 = vsel %vm854, %v853, %v847
        %vm856 = vcmask 785408
        %v857 = vsel %vm856, %v855, %v851
        %v858 = vld [vmem:[#allocation10] sm:$0xff]
        %v859 = vld [vmem:[#allocation10 + $0x8] sm:$0xff]
        %v860 = vld [vmem:[#allocation10 + $0x10] sm:$0xff]
        %v861 = vld [vmem:[#allocation10 + $0x18] sm:$0xff]
        %v862 = vld [vmem:[#allocation10 + $0x20] sm:$0xff]
        %v863 = vld [vmem:[#allocation10 + $0x28] sm:$0xff]
        %v864 = vld [vmem:[#allocation10 + $0x30] sm:$0xff]
        %v865 = vld [vmem:[#allocation10 + $0x38] sm:$0xff]
        %v866 = vld [vmem:[#allocation10 + $0x40] sm:$0xff]
        %v867 = vld [vmem:[#allocation10 + $0x48] sm:$0xff]
        %v868 = vld [vmem:[#allocation10 + $0x50] sm:$0xff]
        %v869 = vld [vmem:[#allocation10 + $0x58] sm:$0xff]
        %v870 = vld [vmem:[#allocation10 + $0x60] sm:$0xff]
        %v871 = vld [vmem:[#allocation10 + $0x68] sm:$0xff]
        %v872 = vld [vmem:[#allocation10 + $0x70] sm:$0xff]
        %v873 = vld [vmem:[#allocation10 + $0x78] sm:$0xff]
        %v874 = vld [vmem:[%s5] sm:$0x1]
        %v876 = vperm.slane %v874, 0
        %878 = vmatpush.msra.mxu0 %v873
        %879 = vmatpush.msra.mxu0 %v872
        %880 = vmatpush.msra.mxu0 %v871
        %881 = vmatpush.msra.mxu0 %v870
        %882 = vmatpush.msra.mxu0 %v869
        %883 = vmatpush.msra.mxu0 %v868
        %884 = vmatpush.msra.mxu0 %v867
        %885 = vmatpush.msra.mxu0 %v866
        %886 = vmatpush.msra.mxu0 %v865
        %887 = vmatpush.msra.mxu0 %v864
        %888 = vmatpush.msra.mxu0 %v863
        %889 = vmatpush.msra.mxu0 %v862
        %890 = vmatpush.msra.mxu0 %v861
        %891 = vmatpush.msra.mxu0 %v860
        %892 = vmatpush.msra.mxu0 %v859
        %893 = vmatpush.msra.mxu0 %v858
        %894 = vmatmul.f32.gmra.mxu0 %v857
        %v895 = vpop.f32.mrf.mxu0
        %v896 = vadd.f32 %v876, %v895
        %897 = vdwg.mxu0
        %v898 = vadd.f32 %v896, %v389
        %899 = vadd.xlane.f32.xlu0 %v898
        %v900 = vpop.xlane.xlu0 %899
        %v901 = vrcp.pop 128.0
        %v902 = vmul.f32 128.0, %v901
        %v903 = vsub.f32 1.0, %v902
        %v904 = vmul.f32 %v901, %v903
        %v905 = vadd.f32 %v901, %v904
        %vm906 = vweird.f32 %v901
        %v907 = vsel %vm906, %v901, %v905
        %v908 = vmul.f32 %v900, %v907
        %v909 = vsub.f32 %v898, %v908
        %v910 = vmul.f32 %v909, %v909
        %911 = vadd.xlane.f32.xlu0 %v910
        %v912 = vpop.xlane.xlu0 %911
        %v913 = vmul.f32 %v912, %v907
        %v914 = vadd.f32 %v913, 1e-05
        %v915 = vrsqrt.pop %v914
        %v916 = vmul.f32 %v915, %v914
        %v917 = vmul.f32 %v916, %v915
        %v918 = vmul.f32 0.5, %v917
        %v919 = vsub.f32 1.5, %v918
        %v920 = vmul.f32 %v915, %v919
        %vm921 = vweird.f32 %v914
        %vm922 = vweird.f32 %v915
        %vm923 = vmor %vm921, %vm922
        %v924 = vsel %vm923, %v915, %v920
        %v925 = vmul.f32 %v909, %v924
        %v926 = vld [vmem:[%s6] sm:$0x1]
        %v928 = vperm.slane %v926, 0
        %v930 = vmul.f32 %v925, %v928
        %v931 = vld [vmem:[%s7] sm:$0x1]
        %v933 = vperm.slane %v931, 0
        %v935 = vadd.f32 %v930, %v933
        %936 = vst [vmem:[%s388] sm:$0xff] %v935
        %s937 = sand.u32 %s208, 1
        %s938 = scalar_lea.sflag [#allocation4], %s937
        %s939 = sand.u32 %s208, 1
        %s940 = smul.addr %s939, 8
        %s941 = scalar_lea.vmem [#allocation11], %s940
        // Predicated region
        $region73: #{tpu_custom_call.1} parent=51 // pred_check
          %p942 = pneg %p218
        $region74: #{tpu_custom_call.1} parent=51 // pred_check_branch
          %944 = sbr.rel (%p942) target = $region76
        $region75: #{tpu_custom_call.1} parent=51 // pred_region
          %946 = vsyncadd %s938, 0
          %s947 = smul.addr %s27, 8
          %s948 = scalar_lea.hbm %s8, %s947
          %s950 = sshll.u32 %s941, 4
          %s951 = int_to_ptr.vmem [resolvable:$true] %s950
          %s952 = sshll.u32 %s948, 4
          %s953 = int_to_ptr.hbm [resolvable:$true] %s952
          %955 = dma.vmem_to_hbm [thread:$0]  %s951, 128, %s953, %s938
        $region76: #{tpu_custom_call.1} parent=51 // pred_fallthru
          _
      $region52: #{tpu_custom_call.1} parent=5 // pred_fallthru
        _
      %p956 = scmp.le.s32.totalorder 2, %s22
      // Predicated region
      $region77: #{tpu_custom_call.1} parent=5 // pred_check
        %p957 = pneg %p956
      $region78: #{tpu_custom_call.1} parent=5 // pred_check_branch
        %959 = sbr.rel (%p957) target = $region80
      $region79: #{tpu_custom_call.1} parent=5 // pred_region
        %s960 = ssub.s32 %s22, 2
        // Predicated region
        $region81: #{tpu_custom_call.1} parent=79 // pred_check
          %p961 = pneg %p224
        $region82: #{tpu_custom_call.1} parent=79 // pred_check_branch
          %963 = sbr.rel (%p961) target = $region84
        $region83: #{tpu_custom_call.1} parent=79 // pred_region
          %s964 = sand.u32 %s209, 1
          %s965 = scalar_lea.sflag [#allocation4], %s964
          %s966 = sand.u32 %s209, 1
          %s967 = smul.addr %s966, 8
          %s968 = scalar_lea.vmem [#allocation11], %s967
          %970 = dma.done %s965, 128
        $region84: #{tpu_custom_call.1} parent=79 // pred_fallthru
          _
      $region80: #{tpu_custom_call.1} parent=5 // pred_fallthru
        _
    $region6: #{tpu_custom_call.1} parent=1 // loop_footer
      %s26 = sadd.s32 1, %s22
    $region7: #{tpu_custom_call.1} parent=1 // loop_footer_branch
      %21 = sbr.rel target = $region3
    $region8: #{tpu_custom_call.1} parent=1 // loop_exit
      _
    %971 = vsyncpa [#allocation3], 1
    %s972 = scalar_lea.sflag [#allocation3], 1
    %973 = vsyncpa %s972, 1
    %974 = vsyncpa [#allocation6], 1
    %975 = vsyncpa [#allocation9], 1
    %976 = vsyncpa [#allocation4], 1
    %s977 = scalar_lea.sflag [#allocation4], 1
    %978 = vsyncpa %s977, 1

</llo_original>
